<compile_context>
chip_gen: v7x
topology: tpu7x:2x2x1
jax: 0.10.0
libtpu: 0.0.40
codegen_flags: <defaults>
</compile_context>

<pallas_src>
import numpy as np
import jax
import jax.numpy as jnp
from jax.experimental import pallas as pl
from jax.experimental.pallas import tpu as pltpu


# ----------------------------------------------------------------------------
# CSR helpers (mirror sparseprop's to_csr_2d storage of the (N, M) weight).
# ----------------------------------------------------------------------------
def to_csr_2d(dense_weight: np.ndarray):
    """dense (N, M) -> (values, (indptr, indices)), scipy-style CSR."""
    n, _ = dense_weight.shape
    indptr = np.zeros(n + 1, dtype=np.int32)
    indices_list, values_list = [], []
    for r in range(n):
        nz = np.nonzero(dense_weight[r])[0]
        indptr[r + 1] = indptr[r] + nz.size
        indices_list.append(nz.astype(np.int32))
        values_list.append(dense_weight[r, nz].astype(np.float32))
    indices = np.concatenate(indices_list) if indices_list else np.zeros(0, np.int32)
    values = np.concatenate(values_list) if values_list else np.zeros(0, np.float32)
    return values, (indptr, indices)


def csr_to_dense(values, indptr, indices, n, m):
    out = np.zeros((n, m), dtype=np.float32)
    for r in range(n):
        cols = indices[indptr[r]:indptr[r + 1]]
        out[r, cols] = values[indptr[r]:indptr[r + 1]]
    return out


def _round_up(x, m):
    return (x + m - 1) // m * m


# ----------------------------------------------------------------------------
# One-time block-sparse packing of the (N, M) weight (pre-transposed to (M, N)).
# ----------------------------------------------------------------------------
def _pack_block_sparse(w_dense, tk, tn, compute_dtype):
    """Returns packed W^T blocks plus the SMEM tables that drive the index_maps.

    w_blocks : (n_tiles_n * max_nkb, tk, tn)   nonzero W^T tiles (zero-padded slots)
    kids     : (n_tiles_n * max_nkb,) int32    flat K-block-id table
    nkb      : (n_tiles_n,) int32              number of valid K blocks per N tile
    """
    n, m = w_dense.shape
    m_pad = _round_up(m, tk)
    n_pad = _round_up(n, tn)
    wt = np.zeros((m_pad, n_pad), dtype=np.float32)
    wt[:m, :n] = w_dense.T  # pre-transpose once: RHS tiles are lane-dense (tk, tn)

    n_tiles_n = n_pad // tn
    n_blocks_k = m_pad // tk
    per_tile_kids = []
    for j in range(n_tiles_n):
        col = wt[:, j * tn:(j + 1) * tn]
        ks = [kb for kb in range(n_blocks_k)
              if np.any(col[kb * tk:(kb + 1) * tk] != 0.0)]
        per_tile_kids.append(ks)

    max_nkb = max(1, max((len(ks) for ks in per_tile_kids), default=1))
    nkb = np.array([len(ks) for ks in per_tile_kids], dtype=np.int32)
    kids = np.zeros((n_tiles_n, max_nkb), dtype=np.int32)
    w_blocks = np.zeros((n_tiles_n * max_nkb, tk, tn), dtype=np.float32)
    for j, ks in enumerate(per_tile_kids):
        for s in range(max_nkb):
            if s < len(ks):
                kb = ks[s]
                kids[j, s] = kb
                w_blocks[j * max_nkb + s] = wt[kb * tk:(kb + 1) * tk,
                                               j * tn:(j + 1) * tn]
            else:
                # Padding slots repeat the last valid K id so the x-tile DMA index
                # does not change across padded steps (no redundant activation DMA).
                kids[j, s] = ks[-1] if ks else 0

    nnz_blocks = int(nkb.sum())
    return (jnp.asarray(w_blocks, dtype=compute_dtype),
            jnp.asarray(kids.reshape(-1)),
            jnp.asarray(nkb),
            max_nkb, nnz_blocks, m_pad, n_pad)


# ----------------------------------------------------------------------------
# Pallas kernel: output-tile-stationary accumulation directly into o_ref (f32).
# ----------------------------------------------------------------------------
def _sparse_linear_kernel(nkb_ref, kids_ref, x_ref, w_ref, b_ref, o_ref):
    del kids_ref  # only used inside the index_maps
    j = pl.program_id(1)
    k = pl.program_id(2)

    @pl.when(k == 0)
    def _init():
        # Output tile is resident across the whole k axis; seed it with the bias.
        o_ref[...] = jnp.broadcast_to(b_ref[...].astype(jnp.float32), o_ref.shape)

    # Only real (nonzero) weight blocks hit the MXU.  This guard is required for
    # correctness because the weight index_map clamps padded k steps onto the
    # last valid block (to skip the DMA), which must not be accumulated twice.
    @pl.when(k < nkb_ref[j])
    def _accumulate():
        o_ref[...] += jnp.dot(x_ref[...], w_ref[...],
                              preferred_element_type=jnp.float32)


# ----------------------------------------------------------------------------
# Module-equivalent wrapper.
# ----------------------------------------------------------------------------
class SparseLinearPallas:
    """Pallas-TPU equivalent of sparseprop's SparseLinear forward: x @ W.T + bias."""

    def __init__(self, dense_weight, bias=None, *, tm=256, tn=256, tk=256,
                 compute_dtype=jnp.bfloat16):
        # bf16 sublane packing needs tm % 16; MXU-friendly 128/256 multiples on N/K.
        assert tm % 16 == 0 and tn % 128 == 0 and tk % 128 == 0
        dense_weight = np.asarray(dense_weight, dtype=np.float32)
        self.N, self.M = dense_weight.shape
        self.tm, self.tn, self.tk = tm, tn, tk
        self.compute_dtype = compute_dtype

        # CSR storage, exactly like the PyTorch module.
        self.W_val, self.W_idx = to_csr_2d(dense_weight)
        self.bias = None if bias is None else np.asarray(bias, dtype=np.float32)

        # One-time setup: reconstruct from CSR and pack block-sparse for the TPU.
        w_from_csr = csr_to_dense(self.W_val, self.W_idx[0], self.W_idx[1],
                                  self.N, self.M)
        (self.w_blocks, self.kids, self.nkb, self.max_nkb,
         self.nnz_blocks, self.m_pad, self.n_pad) = _pack_block_sparse(
            w_from_csr, tk, tn, compute_dtype)

        bias_full = np.zeros((1, self.n_pad), dtype=np.float32)
        if self.bias is not None:
            bias_full[0, :self.N] = self.bias
        self.bias_pad = jnp.asarray(bias_full)

    def __call__(self, x):
        return self.forward(x)

    def forward(self, x):
        x = jnp.asarray(x)
        assert x.ndim == 2, "expected 2-D input (batch, in_features)"
        b, m = x.shape
        assert m == self.M, f"expected in_features={self.M}, got {m}"
        tm, tn, tk = self.tm, self.tn, self.tk
        max_nkb = self.max_nkb

        # Cast once, pad only if needed (no full-size zero buffer + scatter).
        xc = x.astype(self.compute_dtype)
        b_pad = _round_up(b, tm)
        if b_pad != b or self.m_pad != m:
            xc = jnp.pad(xc, ((0, b_pad - b), (0, self.m_pad - m)))

        # For small-batch inference b_pad//tm may be 1; n_pad//tn then carries the
        # v7x 2-TensorCore "parallel" split.
        grid = (b_pad // tm, self.n_pad // tn, max_nkb)

        def x_map(i, j, k, nkb_ref, kids_ref):
            del nkb_ref
            return (i, kids_ref[j * max_nkb + k])

        def w_map(i, j, k, nkb_ref, kids_ref):
            del kids_ref
            # Clamp padded reduction steps onto the last *valid* block: the block
            # index is then unchanged across consecutive steps, so Pallas skips
            # the DMA of the all-zero padding blocks entirely.
            last = jnp.maximum(nkb_ref[j] - 1, 0)
            return (j * max_nkb + jnp.minimum(k, last), 0, 0)

        def b_map(i, j, k, nkb_ref, kids_ref):
            del nkb_ref, kids_ref
            return (0, j)

        def o_map(i, j, k, nkb_ref, kids_ref):
            del nkb_ref, kids_ref
            return (i, j)

        itemsize = int(np.dtype(self.compute_dtype).itemsize)
        flops = 2 * b_pad * tk * tn * self.nnz_blocks
        bytes_accessed = ((b_pad // tm) * self.nnz_blocks * (tm * tk + tk * tn)
                          * itemsize
                          + b_pad * self.n_pad * 4      # f32 output writeback
                          + self.n_pad * 4)             # bias
        cost = pl.CostEstimate(flops=int(flops), transcendentals=0,
                               bytes_accessed=int(bytes_accessed))

        # VMEM budget: double-buffered bf16 x/w tiles + resident f32 output tile.
        # Window chosen to be valid on all generations (v5e 16 MiB scoped default,
        # v7x 64 MiB physical).
        tile_bytes = (2 * (tm * tk + tk * tn) * itemsize
                      + 2 * tm * tn * 4 + 2 * tn * 4)
        vmem_limit = int(min(max(6 * tile_bytes, 32 * 2 ** 20), 48 * 2 ** 20))

        out_pad = pl.pallas_call(
            _sparse_linear_kernel,
            out_shape=jax.ShapeDtypeStruct((b_pad, self.n_pad), jnp.float32),
            grid_spec=pltpu.PrefetchScalarGridSpec(
                num_scalar_prefetch=2,
                grid=grid,
                in_specs=[
                    pl.BlockSpec((tm, tk), x_map),         # activations
                    pl.BlockSpec((None, tk, tn), w_map),   # packed W^T blocks (squeezed)
                    pl.BlockSpec((1, tn), b_map),          # bias
                ],
                out_specs=pl.BlockSpec((tm, tn), o_map),
            ),
            compiler_params=pltpu.CompilerParams(
                dimension_semantics=("parallel", "parallel", "arbitrary"),
                vmem_limit_bytes=vmem_limit),
            cost_estimate=cost,
        )(self.nkb, self.kids, xc, self.w_blocks, self.bias_pad)

        return out_pad[:b, :self.N]


# ----------------------------------------------------------------------------
# Self-test.
# ----------------------------------------------------------------------------
if __name__ == "__main__":
    key = jax.random.PRNGKey(0)
    k1, k2, k3, k4 = jax.random.split(key, 4)

    # Small demo problem sized so every grid axis has at least one full tile.
    B, M, N = 33, 1024, 768            # batch, in_features, out_features
    TM, TN, TK = 256, 256, 256

    # Block-structured sparse weight: ~50% of (TN, TK) tiles identically zero.
    w_dense = jax.random.normal(k1, (N, M), dtype=jnp.float32)
    block_mask = (jax.random.uniform(k2, (N // TN, M // TK)) < 0.5).astype(jnp.float32)
    mask = jnp.kron(block_mask, jnp.ones((TN, TK), jnp.float32))
    w_sparse = np.asarray(w_dense * mask)

    bias = np.asarray(jax.random.normal(k3, (N,), dtype=jnp.float32))
    x = np.asarray(jax.random.normal(k4, (B, M), dtype=jnp.float32))

    layer = SparseLinearPallas(w_sparse, bias=bias, tm=TM, tn=TN, tk=TK,
                               compute_dtype=jnp.bfloat16)
    out = jax.block_until_ready(layer(x))

    # Reference: x @ W.T + b at the kernel's bf16 input precision, float64 accum.
    x_b = np.asarray(jnp.asarray(x).astype(jnp.bfloat16).astype(jnp.float32),
                     dtype=np.float64)
    w_b = np.asarray(jnp.asarray(w_sparse).astype(jnp.bfloat16).astype(jnp.float32),
                     dtype=np.float64)
    ref = x_b @ w_b.T + np.asarray(bias, dtype=np.float64)

    np.testing.assert_allclose(np.asarray(out, dtype=np.float64), ref,
                               rtol=2e-3, atol=5e-3)
    # TODO(synk): backward pass (SparseLinearFunction grad) not implemented; forward only.
    print("KERNEL_OK")
</pallas_src>

<mosaic_0001>
module attributes {stable_mosaic.version = 11 : i64} {
  func.func @_sparse_linear_kernel(%arg0: i32, %arg1: i32, %arg2: i32, %arg3: memref<3xi32, #tpu.memory_space<smem>>, %arg4: memref<9xi32, #tpu.memory_space<smem>>, %arg5: memref<256x256xbf16, #tpu.memory_space<vmem>>, %arg6: memref<1x256x256xbf16, #tpu.memory_space<vmem>>, %arg7: memref<1x256xf32, #tpu.memory_space<vmem>>, %arg8: memref<256x256xf32, #tpu.memory_space<vmem>>) attributes {dimension_semantics = [#tpu.dimension_semantics<parallel>, #tpu.dimension_semantics<parallel>, #tpu.dimension_semantics<arbitrary>], iteration_bounds = array<i64: 1, 3, 3>, scalar_prefetch = 2 : i64, scratch_operands = 0 : i64, tpu.core_type = #tpu.core_type<tc>, window_params = [{transform_indices = @transform_0, window_bounds = array<i64: 256, 256>}, {transform_indices = @transform_1, window_bounds = array<i64: 1, 256, 256>}, {transform_indices = @transform_2, window_bounds = array<i64: 1, 256>}, {transform_indices = @transform_3, window_bounds = array<i64: 256, 256>}]} {
    %c0_i32 = arith.constant 0 : i32
    %0 = arith.cmpi eq, %arg2, %c0_i32 : i32
    %1 = arith.extui %0 : i1 to i32
    %c0_i32_0 = arith.constant 0 : i32
    %2 = arith.cmpi ne, %1, %c0_i32_0 : i32
    scf.if %2 {
      %c0 = arith.constant 0 : index
      %c0_2 = arith.constant 0 : index
      %8 = vector.load %arg7[%c0, %c0_2] : memref<1x256xf32, #tpu.memory_space<vmem>>, vector<1x256xf32>
      %9 = vector.shape_cast %8 : vector<1x256xf32> to vector<1x256xf32>
      %10 = vector.broadcast %9 : vector<1x256xf32> to vector<256x256xf32>
      %c0_3 = arith.constant 0 : index
      %c0_4 = arith.constant 0 : index
      %11 = vector.load %arg8[%c0_3, %c0_4] : memref<256x256xf32, #tpu.memory_space<vmem>>, vector<256x256xf32>
      tpu.vector_store %arg8[%c0_3, %c0_4], %10 {strides = array<i32>} : memref<256x256xf32, #tpu.memory_space<vmem>>, vector<256x256xf32>,
    } else {
    }
    %3 = arith.index_cast %arg1 : i32 to index
    %4 = memref.load %arg3[%3] : memref<3xi32, #tpu.memory_space<smem>>
    %5 = arith.cmpi slt, %arg2, %4 : i32
    %6 = arith.extui %5 : i1 to i32
    %c0_i32_1 = arith.constant 0 : i32
    %7 = arith.cmpi ne, %6, %c0_i32_1 : i32
    scf.if %7 {
      %c0 = arith.constant 0 : index
      %c0_2 = arith.constant 0 : index
      %8 = vector.load %arg8[%c0, %c0_2] : memref<256x256xf32, #tpu.memory_space<vmem>>, vector<256x256xf32>
      %c0_3 = arith.constant 0 : index
      %c0_4 = arith.constant 0 : index
      %9 = vector.load %arg5[%c0_3, %c0_4] : memref<256x256xbf16, #tpu.memory_space<vmem>>, vector<256x256xbf16>
      %c0_5 = arith.constant 0 : index
      %c0_6 = arith.constant 0 : index
      %c0_7 = arith.constant 0 : index
      %10 = vector.load %arg6[%c0_5, %c0_6, %c0_7] : memref<1x256x256xbf16, #tpu.memory_space<vmem>>, vector<1x256x256xbf16>
      %11 = vector.shape_cast %10 : vector<1x256x256xbf16> to vector<256x256xbf16>
      %cst = arith.constant dense<0.000000e+00> : vector<256x256xf32>
      %12 = tpu.matmul %9, %11, %cst {dimension_numbers = #tpu.dot_dimension_numbers<[1], [0], [0], [1], [0, 0, 1, 1], [], []>} : vector<256x256xbf16>, vector<256x256xbf16>, vector<256x256xf32> -> vector<256x256xf32>
      %13 = arith.addf %8, %12 : vector<256x256xf32>
      %c0_8 = arith.constant 0 : index
      %c0_9 = arith.constant 0 : index
      %14 = vector.load %arg8[%c0_8, %c0_9] : memref<256x256xf32, #tpu.memory_space<vmem>>, vector<256x256xf32>
      tpu.vector_store %arg8[%c0_8, %c0_9], %13 {strides = array<i32>} : memref<256x256xf32, #tpu.memory_space<vmem>>, vector<256x256xf32>,
    } else {
    }
    return
  }
  func.func @transform_0(%arg0: i32, %arg1: i32, %arg2: i32, %arg3: memref<3xi32, #tpu.memory_space<smem>>, %arg4: memref<9xi32, #tpu.memory_space<smem>>) -> (i32, i32) {
    %c3_i32 = arith.constant 3 : i32
    %0 = arith.muli %arg1, %c3_i32 : i32
    %1 = arith.addi %0, %arg2 : i32
    %2 = arith.index_cast %1 : i32 to index
    %3 = memref.load %arg4[%2] : memref<9xi32, #tpu.memory_space<smem>>
    %c0_i32 = arith.constant 0 : i32
    return %arg0, %3 : i32, i32
  }
  func.func @transform_1(%arg0: i32, %arg1: i32, %arg2: i32, %arg3: memref<3xi32, #tpu.memory_space<smem>>, %arg4: memref<9xi32, #tpu.memory_space<smem>>) -> (i32, i32, i32) {
    %0 = arith.index_cast %arg1 : i32 to index
    %1 = memref.load %arg3[%0] : memref<3xi32, #tpu.memory_space<smem>>
    %c1_i32 = arith.constant 1 : i32
    %2 = arith.subi %1, %c1_i32 : i32
    %c0_i32 = arith.constant 0 : i32
    %3 = arith.maxsi %2, %c0_i32 : i32
    %c3_i32 = arith.constant 3 : i32
    %4 = arith.muli %arg1, %c3_i32 : i32
    %5 = arith.minsi %arg2, %3 : i32
    %6 = arith.addi %4, %5 : i32
    %c0_i32_0 = arith.constant 0 : i32
    %c0_i32_1 = arith.constant 0 : i32
    %c0_i32_2 = arith.constant 0 : i32
    return %6, %c0_i32_0, %c0_i32_1 : i32, i32, i32
  }
  func.func @transform_2(%arg0: i32, %arg1: i32, %arg2: i32, %arg3: memref<3xi32, #tpu.memory_space<smem>>, %arg4: memref<9xi32, #tpu.memory_space<smem>>) -> (i32, i32) {
    %c0_i32 = arith.constant 0 : i32
    %c0_i32_0 = arith.constant 0 : i32
    return %c0_i32, %arg1 : i32, i32
  }
  func.func @transform_3(%arg0: i32, %arg1: i32, %arg2: i32, %arg3: memref<3xi32, #tpu.memory_space<smem>>, %arg4: memref<9xi32, #tpu.memory_space<smem>>) -> (i32, i32) {
    %c0_i32 = arith.constant 0 : i32
    return %arg0, %arg1 : i32, i32
  }
}

</mosaic_0001>

<llo_original>
// kernel: tpu_custom_call.1
$region0: #{tpu_custom_call.1}
  #allocation0 [shape = 'u32[]', space=smem, size = 0x4, offset = 0x4, fixed_abs, tag = 'smem constant byte address 0x4 - core index']
  #allocation1 [shape = 'u32[144,128]{1,0:T(1,128)}', space=vmem, size = 0x12000, scoped, tag = 'internal scratch']
  #allocation2 [shape = 's32[1]{0}', space=sflag, size = 0x4, scoped, tag = 'scoped memory for tpu_custom_call.1']
  #allocation3 [shape = 'u8[512]{0}', space=smem, size = 0x200, scoped, tag = 'prefetched SMEM operand 0']
  #allocation4 [shape = 'u8[512]{0}', space=smem, size = 0x200, scoped, tag = 'prefetched SMEM operand 1']
  %s0 = inlined_call_operand.hbm [shape: s32[3], index: 0, kind: input, shape index: {}]
  %s1 = inlined_call_operand.hbm [shape: s32[9], index: 1, kind: input, shape index: {}]
  %s2 = inlined_call_operand.hbm [shape: bf16[256,1024], index: 2, kind: input, shape index: {}]
  %s3 = inlined_call_operand.hbm [shape: bf16[9,256,256], index: 3, kind: input, shape index: {}]
  %s4 = inlined_call_operand.hbm [shape: f32[1,768], index: 4, kind: input, shape index: {}]
  %s5 = inlined_call_operand.hbm [shape: f32[256,768], index: 5, kind: output, shape index: {}]
  %s6 = sld [smem:[#allocation0]]
  $region65: #{tpu_custom_call.1} parent=0
    _
  %s8 = ssub.s32 1, %s6
  %s9 = scalar_select 0, %s8, %s6
  %11 = dma.hbm_to_smem %s0, 16, [#allocation3], [#allocation2]
  %13 = dma.hbm_to_smem %s1, 16, [#allocation4], [#allocation2]
  %14 = dma.done [#allocation2], 32
  %15 = sfence
  $region1: #{tpu_custom_call.1} parent=0
    #allocation5 [shape = 'u8[262144]{0}', space=vmem, size = 0x40000, scoped, tag = 'input window, operand 2']
    #allocation6 [shape = 's32[2]{0}', space=sflag, size = 0x8, scoped, tag = 'scoped memory for tpu_custom_call.1']
    #allocation7 [shape = 's32[2]{0}', space=sflag, size = 0x8, scoped, tag = 'scoped memory for tpu_custom_call.1']
    #allocation8 [shape = 'u8[262144]{0}', space=vmem, size = 0x40000, scoped, tag = 'input window, operand 3']
    #allocation9 [shape = 's32[2]{0}', space=sflag, size = 0x8, scoped, tag = 'scoped memory for tpu_custom_call.1']
    #allocation10 [shape = 'u8[2048]{0}', space=vmem, size = 0x800, scoped, tag = 'input window, operand 4']
    #allocation11 [shape = 'u8[524288]{0}', space=vmem, size = 0x80000, scoped, tag = 'output window, operand 0']
    %16 = vsyncpa [#allocation6], 0
    %s17 = scalar_lea.sflag [#allocation6], 1
    %18 = vsyncpa %s17, 0
    %19 = vsyncpa [#allocation9], 0
    %s20 = scalar_lea.sflag [#allocation9], 1
    %21 = vsyncpa %s20, 0
    %22 = vsyncpa [#allocation7], 0
    %s23 = scalar_lea.sflag [#allocation7], 1
    %24 = vsyncpa %s23, 0
    loop: start=0, step=1, limit=11
    $region2: #{tpu_custom_call.1} parent=1 // loop_pre_header
      _
    $region3: #{tpu_custom_call.1} parent=1 // loop_header
      %s26 = sphi 0, %s30
      %p27 = scmp.ge.s32.totalorder %s26, 11
      %s33 = sphi 0, %s52
      %s34 = sphi 0, %s48
      %s35 = sphi 0, %s44
      %s36 = sphi 0, %s33
      %s37 = sphi 0, %s34
      %s38 = sphi 0, %s35
      %s39 = sphi 0, %s36
      %s40 = sphi 0, %s37
      %s41 = sphi 0, %s38
      %s63 = sphi 0, %s65
      %s66 = sphi 0, %s63
      %s67 = sphi 0, %s66
      %s83 = sphi 0, %s67
      %s105 = sphi 0, %s107
      %s108 = sphi 0, %s105
      %s109 = sphi 0, %s108
      %s125 = sphi 0, %s109
      %s131 = sphi 0, %s133
      %s134 = sphi 0, %s131
      %s135 = sphi 0, %s134
      %s151 = sphi 0, %s135
      %s159 = sphi 0, %s161
      %s162 = sphi 0, %s159
      %s163 = sphi 0, %s162
      %s179 = sphi 0, %s163
    $region4: #{tpu_custom_call.1} parent=1 // loop_header_branch
      %29 = sbr.rel (%p27) target = $region8
    $region5: #{tpu_custom_call.1} parent=1 // loop_body
      %s31 = ssub.s32 %s26, 1
      %s32 = ssub.s32 %s26, 2
      %s42 = sadd.s32 1, %s35
      %p43 = scmp.ge.s32.totalorder %s42, 3
      %s44 = scalar_select %p43, 0, %s42
      %s45 = sadd.s32 1, %s34
      %s46 = scalar_select %p43, %s45, %s34
      %p47 = scmp.ge.s32.totalorder %s46, 3
      %s48 = scalar_select %p47, 0, %s46
      %s49 = sadd.s32 1, %s33
      %s50 = scalar_select %p47, %s49, %s33
      %p51 = scmp.ge.s32.totalorder %s50, 1
      %s52 = scalar_select %p51, 0, %s50
      %s53 = smul.u32 %s34, 3
      %s54 = sadd.s32 %s53, %s35
      %s55 = sld [smem:[#allocation4 + %s54]]
      %s56 = smul.u32 %s48, 3
      %s57 = sadd.s32 %s56, %s44
      %s58 = sld [smem:[#allocation4 + %s57]]
      %s59 = ssub.s32 %s33, %s52
      %s60 = ssub.s32 %s55, %s58
      %s61 = sor.u32 %s59, %s60
      %p62 = scmp.eq.s32.totalorder %s61, 0
      %s64 = sadd.s32 %s63, 1
      %s65 = scalar_select %p62, %s63, %s64
      %p68 = pneg %p62
      %p69 = scmp.eq.s32.totalorder %s26, 8
      %p70 = por %p68, %p69
      %p71 = scmp.ne.s32.totalorder %s63, %s66
      %p72 = scmp.eq.s32.totalorder %s26, 0
      %p73 = por %p71, %p72
      %p74 = scmp.ne.s32.totalorder %s63, %s66
      %p75 = scmp.eq.s32.totalorder %s31, 8
      %p76 = por %p74, %p75
      %p77 = scmp.ne.s32.totalorder %s66, %s67
      %p78 = scmp.eq.s32.totalorder %s31, 0
      %p79 = por %p77, %p78
      %p80 = scmp.ne.s32.totalorder %s66, %s67
      %p81 = scmp.eq.s32.totalorder %s32, 8
      %p82 = por %p80, %p81
      %p84 = scmp.ne.s32.totalorder %s67, %s83
      %p85 = scmp.eq.s32.totalorder %s32, 0
      %p86 = por %p84, %p85
      %s87 = sld [smem:[#allocation3 + %s34]]
      %s88 = ssub.s32 %s87, 1
      %p89 = scmp.gt.s32.totalorder %s88, 0
      %s90 = scalar_select %p89, %s88, 0
      %s91 = smul.u32 %s34, 3
      %p92 = scmp.lt.s32.totalorder %s35, %s90
      %s93 = scalar_select %p92, %s35, %s90
      %s94 = sadd.s32 %s91, %s93
      %s95 = sld [smem:[#allocation3 + %s48]]
      %s96 = ssub.s32 %s95, 1
      %p97 = scmp.gt.s32.totalorder %s96, 0
      %s98 = scalar_select %p97, %s96, 0
      %s99 = smul.u32 %s48, 3
      %p100 = scmp.lt.s32.totalorder %s44, %s98
      %s101 = scalar_select %p100, %s44, %s98
      %s102 = sadd.s32 %s99, %s101
      %s103 = ssub.s32 %s94, %s102
      %p104 = scmp.eq.s32.totalorder %s103, 0
      %s106 = sadd.s32 %s105, 1
      %s107 = scalar_select %p104, %s105, %s106
      %p110 = pneg %p104
      %p111 = scmp.eq.s32.totalorder %s26, 8
      %p112 = por %p110, %p111
      %p113 = scmp.ne.s32.totalorder %s105, %s108
      %p114 = scmp.eq.s32.totalorder %s26, 0
      %p115 = por %p113, %p114
      %p116 = scmp.ne.s32.totalorder %s105, %s108
      %p117 = scmp.eq.s32.totalorder %s31, 8
      %p118 = por %p116, %p117
      %p119 = scmp.ne.s32.totalorder %s108, %s109
      %p120 = scmp.eq.s32.totalorder %s31, 0
      %p121 = por %p119, %p120
      %p122 = scmp.ne.s32.totalorder %s108, %s109
      %p123 = scmp.eq.s32.totalorder %s32, 8
      %p124 = por %p122, %p123
      %p126 = scmp.ne.s32.totalorder %s109, %s125
      %p127 = scmp.eq.s32.totalorder %s32, 0
      %p128 = por %p126, %p127
      %s129 = ssub.s32 %s34, %s48
      %p130 = scmp.eq.s32.totalorder %s129, 0
      %s132 = sadd.s32 %s131, 1
      %s133 = scalar_select %p130, %s131, %s132
      %p136 = pneg %p130
      %p137 = scmp.eq.s32.totalorder %s26, 8
      %p138 = por %p136, %p137
      %p139 = scmp.ne.s32.totalorder %s131, %s134
      %p140 = scmp.eq.s32.totalorder %s26, 0
      %p141 = por %p139, %p140
      %p142 = scmp.ne.s32.totalorder %s131, %s134
      %p143 = scmp.eq.s32.totalorder %s31, 8
      %p144 = por %p142, %p143
      %p145 = scmp.ne.s32.totalorder %s134, %s135
      %p146 = scmp.eq.s32.totalorder %s31, 0
      %p147 = por %p145, %p146
      %p148 = scmp.ne.s32.totalorder %s134, %s135
      %p149 = scmp.eq.s32.totalorder %s32, 8
      %p150 = por %p148, %p149
      %p152 = scmp.ne.s32.totalorder %s135, %s151
      %p153 = scmp.eq.s32.totalorder %s32, 0
      %p154 = por %p152, %p153
      %s155 = ssub.s32 %s33, %s52
      %s156 = ssub.s32 %s34, %s48
      %s157 = sor.u32 %s155, %s156
      %p158 = scmp.eq.s32.totalorder %s157, 0
      %s160 = sadd.s32 %s159, 1
      %s161 = scalar_select %p158, %s159, %s160
      %p164 = pneg %p158
      %p165 = scmp.eq.s32.totalorder %s26, 8
      %p166 = por %p164, %p165
      %p167 = scmp.ne.s32.totalorder %s159, %s162
      %p168 = scmp.eq.s32.totalorder %s26, 0
      %p169 = por %p167, %p168
      %p170 = scmp.ne.s32.totalorder %s159, %s162
      %p171 = scmp.eq.s32.totalorder %s31, 8
      %p172 = por %p170, %p171
      %p173 = scmp.ne.s32.totalorder %s162, %s163
      %p174 = scmp.eq.s32.totalorder %s31, 0
      %p175 = por %p173, %p174
      %p176 = scmp.ne.s32.totalorder %s162, %s163
      %p177 = scmp.eq.s32.totalorder %s32, 8
      %p178 = por %p176, %p177
      %p180 = scmp.ne.s32.totalorder %s163, %s179
      %p181 = scmp.eq.s32.totalorder %s32, 0
      %p182 = por %p180, %p181
      %p183 = scmp.le.s32.totalorder 1, %s26
      %p184 = scmp.lt.s32.totalorder %s26, 10
      %p185 = pnand %p183, %p184
      %p186 = pneg %p185
      // Predicated region
      $region9: #{tpu_custom_call.1} parent=5 // pred_check
        _
      $region10: #{tpu_custom_call.1} parent=5 // pred_check_branch
        %188 = sbr.rel (%p185) target = $region12
      $region11: #{tpu_custom_call.1} parent=5 // pred_region
        %s189 = ssub.s32 %s26, 1
      $region12: #{tpu_custom_call.1} parent=5 // pred_fallthru
        _
      %p190 = scmp.lt.s32.totalorder %s26, 9
      // Predicated region
      $region13: #{tpu_custom_call.1} parent=5 // pred_check
        %p191 = pneg %p190
      $region14: #{tpu_custom_call.1} parent=5 // pred_check_branch
        %193 = sbr.rel (%p191) target = $region16
      $region15: #{tpu_custom_call.1} parent=5 // pred_region
        // Predicated region
        $region17: #{tpu_custom_call.1} parent=15 // pred_check
          %p194 = pneg %p73
        $region18: #{tpu_custom_call.1} parent=15 // pred_check_branch
          %196 = sbr.rel (%p194) target = $region20
        $region19: #{tpu_custom_call.1} parent=15 // pred_region
          %s197 = sand.u32 %s63, 1
          %s198 = scalar_lea.sflag [#allocation6], %s197
          %s199 = sand.u32 %s63, 1
          %s200 = smul.addr %s199, 256
          %s201 = scalar_lea.vmem [#allocation5], %s200
          %s202 = smul.u32 %s34, 3
          %s203 = sadd.s32 %s202, %s35
          %s204 = sld [smem:[#allocation4 + %s203]]
          %s205 = smul.u32 32, %s33
          %s206 = smul.u32 2, %s204
          %s208 = ssub.s32 4096, 4096
          %209 = vsyncadd %s198, %s208
          %s210 = smul.addr %s205, 8
          %s211 = sadd.s32 %s206, %s210
          %s212 = smul.addr %s211, 64
          %s213 = scalar_lea.hbm %s2, %s212
          %s214 = sshll.u32 %s201, 4
          %s215 = int_to_ptr.vmem [resolvable:$true] %s214
          %220 = dma.hbm_to_vmem [thread:$0]  %s213, 4096, %s215, %s198, 512, 128, 8
        $region20: #{tpu_custom_call.1} parent=15 // pred_fallthru
          _
        // Predicated region
        $region21: #{tpu_custom_call.1} parent=15 // pred_check
          %p221 = pneg %p115
        $region22: #{tpu_custom_call.1} parent=15 // pred_check_branch
          %223 = sbr.rel (%p221) target = $region24
        $region23: #{tpu_custom_call.1} parent=15 // pred_region
          %s224 = sand.u32 %s26, 1
          %s225 = scalar_lea.sflag [#allocation9], %s224
          %s226 = sand.u32 %s105, 1
          %s227 = smul.addr %s226, 256
          %s228 = scalar_lea.vmem [#allocation8], %s227
          %s229 = sld [smem:[#allocation3 + %s34]]
          %s230 = ssub.s32 %s229, 1
          %p231 = scmp.gt.s32.totalorder %s230, 0
          %s232 = scalar_select %p231, %s230, 0
          %s233 = smul.u32 %s34, 3
          %p234 = scmp.lt.s32.totalorder %s35, %s232
          %s235 = scalar_select %p234, %s35, %s232
          %s236 = sadd.s32 %s233, %s235
          %s238 = ssub.s32 4096, 4096
          %239 = vsyncadd %s225, %s238
          %s240 = smul.addr %s236, 64
          %s241 = smul.addr %s240, 64
          %s242 = scalar_lea.hbm %s3, %s241
          %s243 = sshll.u32 %s228, 4
          %s244 = int_to_ptr.vmem [resolvable:$true] %s243
          %249 = dma.hbm_to_vmem [thread:$0]  %s242, 4096, %s244, %s225, 128, 128, 8
        $region24: #{tpu_custom_call.1} parent=15 // pred_fallthru
          _
        // Predicated region
        $region25: #{tpu_custom_call.1} parent=15 // pred_check
          %p250 = pneg %p141
        $region26: #{tpu_custom_call.1} parent=15 // pred_check_branch
          %252 = sbr.rel (%p250) target = $region28
        $region27: #{tpu_custom_call.1} parent=15 // pred_region
          %s253 = sand.u32 %s26, 1
          %s254 = scalar_lea.sflag [#allocation9], %s253
          %s255 = sand.u32 %s131, 1
          %s256 = smul.addr %s255, 2
          %s257 = scalar_lea.vmem [#allocation10], %s256
          %s258 = smul.u32 2, %s34
          %s260 = ssub.s32 32, 32
          %261 = vsyncadd %s254, %s260
          %s262 = smul.addr %s258, 16
          %s263 = scalar_lea.hbm %s4, %s262
          %s265 = sshll.u32 %s257, 4
          %s266 = int_to_ptr.vmem [resolvable:$true] %s265
          %268 = dma.hbm_to_vmem [thread:$0]  %s263, 32, %s266, %s254
        $region28: #{tpu_custom_call.1} parent=15 // pred_fallthru
          _
      $region16: #{tpu_custom_call.1} parent=5 // pred_fallthru
        _
      %p269 = scmp.le.s32.totalorder 1, %s26
      %p270 = scmp.lt.s32.totalorder %s26, 10
      %p271 = pnand %p269, %p270
      %p272 = pneg %p271
      // Predicated region
      $region29: #{tpu_custom_call.1} parent=5 // pred_check
        _
      $region30: #{tpu_custom_call.1} parent=5 // pred_check_branch
        %274 = sbr.rel (%p271) target = $region32
      $region31: #{tpu_custom_call.1} parent=5 // pred_region
        %s275 = ssub.s32 %s26, 1
        %s276 = sand.u32 %s66, 1
        %s277 = scalar_lea.sflag [#allocation6], %s276
        %s278 = sand.u32 %s66, 1
        %s279 = smul.addr %s278, 256
        %s280 = scalar_lea.vmem [#allocation5], %s279
        // Predicated region
        $region33: #{tpu_custom_call.1} parent=31 // pred_check
          %p281 = pneg %p79
        $region34: #{tpu_custom_call.1} parent=31 // pred_check_branch
          %283 = sbr.rel (%p281) target = $region36
        $region35: #{tpu_custom_call.1} parent=31 // pred_region
          %284 = dma.done %s277, 4096
        $region36: #{tpu_custom_call.1} parent=31 // pred_fallthru
          _
        %s285 = sand.u32 %s31, 1
        %s286 = scalar_lea.sflag [#allocation9], %s285
        %s287 = sand.u32 %s108, 1
        %s288 = smul.addr %s287, 256
        %s289 = scalar_lea.vmem [#allocation8], %s288
        // Predicated region
        $region37: #{tpu_custom_call.1} parent=31 // pred_check
          %p290 = pneg %p121
        $region38: #{tpu_custom_call.1} parent=31 // pred_check_branch
          %292 = sbr.rel (%p290) target = $region40
        $region39: #{tpu_custom_call.1} parent=31 // pred_region
          %293 = dma.done %s286, 4096
        $region40: #{tpu_custom_call.1} parent=31 // pred_fallthru
          _
        %s294 = sand.u32 %s31, 1
        %s295 = scalar_lea.sflag [#allocation9], %s294
        %s296 = sand.u32 %s134, 1
        %s297 = smul.addr %s296, 2
        %s298 = scalar_lea.vmem [#allocation10], %s297
        // Predicated region
        $region41: #{tpu_custom_call.1} parent=31 // pred_check
          %p299 = pneg %p147
        $region42: #{tpu_custom_call.1} parent=31 // pred_check_branch
          %301 = sbr.rel (%p299) target = $region44
        $region43: #{tpu_custom_call.1} parent=31 // pred_region
          %302 = dma.done %s295, 32
        $region44: #{tpu_custom_call.1} parent=31 // pred_fallthru
          _
        %s303 = sand.u32 %s66, 1
        %s304 = scalar_lea.sflag [#allocation6], %s303
        %s305 = sand.u32 %s66, 1
        %s306 = smul.addr %s305, 256
        %s307 = scalar_lea.vmem [#allocation5], %s306
        %p308 = pneg %p79
        %p309 = pneg %p76
        %s310 = sand.u32 %s31, 1
        %s311 = scalar_lea.sflag [#allocation9], %s310
        %s312 = sand.u32 %s108, 1
        %s313 = smul.addr %s312, 256
        %s314 = scalar_lea.vmem [#allocation8], %s313
        %p315 = pneg %p121
        %p316 = pneg %p118
        %s317 = sand.u32 %s31, 1
        %s318 = scalar_lea.sflag [#allocation9], %s317
        %s319 = sand.u32 %s134, 1
        %s320 = smul.addr %s319, 2
        %s321 = scalar_lea.vmem [#allocation10], %s320
        %p322 = pneg %p147
        %p323 = pneg %p144
        %p324 = pneg %p175
        %p325 = pneg %p172
        %s326 = sand.u32 %s162, 1
        %s327 = scalar_lea.sflag [#allocation7], %s326
        %s328 = sand.u32 %s162, 1
        %s329 = smul.addr %s328, 512
        %s330 = scalar_lea.vmem [#allocation11], %s329
        %s331 = smul.u32 %s37, 3
        %s332 = sadd.s32 %s331, %s38
        %s333 = sld [smem:[#allocation4 + %s332]]
        %s334 = smul.u32 32, %s36
        %s335 = smul.u32 2, %s333
        %s336 = sld [smem:[#allocation3 + %s37]]
        %s337 = ssub.s32 %s336, 1
        %p338 = scmp.gt.s32.totalorder %s337, 0
        %s339 = scalar_select %p338, %s337, 0
        %s340 = smul.u32 %s37, 3
        %p341 = scmp.lt.s32.totalorder %s38, %s339
        %s342 = scalar_select %p341, %s38, %s339
        %s343 = sadd.s32 %s340, %s342
        %s344 = smul.u32 2, %s37
        %s345 = smul.u32 32, %s36
        %s346 = smul.u32 2, %s37
        %p347 = scmp.eq.s32.totalorder %s38, 0
        // Predicated region
        $region45: #{tpu_custom_call.1} parent=31 // pred_check
          %p348 = pneg %p347
        $region46: #{tpu_custom_call.1} parent=31 // pred_check_branch
          %350 = sbr.rel (%p348) target = $region48
        $region47: #{tpu_custom_call.1} parent=31 // pred_region
          %v351 = vld [vmem:[%s298] sm:$0x3]
          %v353 = vlaneseq
          %v354 = vshrl.u32 %v353, 7
          %v355 = vsub.s32 0, %v354
          %v356 = vrot.slane %v351, %v355
          %v357 = vlaneseq
          %v358 = vshrl.u32 %v357, 7
          %v359 = vsub.s32 1, %v358
          %v360 = vrot.slane %v351, %v359
          %363 = vst [vmem:[%s330] sm:$0xff] %v356
          %364 = vst [vmem:[%s330 + $0x8] sm:$0xff] %v360
          %365 = vst [vmem:[%s330 + $0x10] sm:$0xff] %v356
          %366 = vst [vmem:[%s330 + $0x18] sm:$0xff] %v360
          %367 = vst [vmem:[%s330 + $0x20] sm:$0xff] %v356
          %368 = vst [vmem:[%s330 + $0x28] sm:$0xff] %v360
          %369 = vst [vmem:[%s330 + $0x30] sm:$0xff] %v356
          %370 = vst [vmem:[%s330 + $0x38] sm:$0xff] %v360
          %371 = vst [vmem:[%s330 + $0x40] sm:$0xff] %v356
          %372 = vst [vmem:[%s330 + $0x48] sm:$0xff] %v360
          %373 = vst [vmem:[%s330 + $0x50] sm:$0xff] %v356
          %374 = vst [vmem:[%s330 + $0x58] sm:$0xff] %v360
          %375 = vst [vmem:[%s330 + $0x60] sm:$0xff] %v356
          %376 = vst [vmem:[%s330 + $0x68] sm:$0xff] %v360
          %377 = vst [vmem:[%s330 + $0x70] sm:$0xff] %v356
          %378 = vst [vmem:[%s330 + $0x78] sm:$0xff] %v360
          %379 = vst [vmem:[%s330 + $0x80] sm:$0xff] %v356
          %380 = vst [vmem:[%s330 + $0x88] sm:$0xff] %v360
          %381 = vst [vmem:[%s330 + $0x90] sm:$0xff] %v356
          %382 = vst [vmem:[%s330 + $0x98] sm:$0xff] %v360
          %383 = vst [vmem:[%s330 + $0xa0] sm:$0xff] %v356
          %384 = vst [vmem:[%s330 + $0xa8] sm:$0xff] %v360
          %385 = vst [vmem:[%s330 + $0xb0] sm:$0xff] %v356
          %386 = vst [vmem:[%s330 + $0xb8] sm:$0xff] %v360
          %387 = vst [vmem:[%s330 + $0xc0] sm:$0xff] %v356
          %388 = vst [vmem:[%s330 + $0xc8] sm:$0xff] %v360
          %389 = vst [vmem:[%s330 + $0xd0] sm:$0xff] %v356
          %390 = vst [vmem:[%s330 + $0xd8] sm:$0xff] %v360
          %391 = vst [vmem:[%s330 + $0xe0] sm:$0xff] %v356
          %392 = vst [vmem:[%s330 + $0xe8] sm:$0xff] %v360
          %393 = vst [vmem:[%s330 + $0xf0] sm:$0xff] %v356
          %394 = vst [vmem:[%s330 + $0xf8] sm:$0xff] %v360
          %395 = vst [vmem:[%s330 + $0x100] sm:$0xff] %v356
          %396 = vst [vmem:[%s330 + $0x108] sm:$0xff] %v360
          %397 = vst [vmem:[%s330 + $0x110] sm:$0xff] %v356
          %398 = vst [vmem:[%s330 + $0x118] sm:$0xff] %v360
          %399 = vst [vmem:[%s330 + $0x120] sm:$0xff] %v356
          %400 = vst [vmem:[%s330 + $0x128] sm:$0xff] %v360
          %401 = vst [vmem:[%s330 + $0x130] sm:$0xff] %v356
          %402 = vst [vmem:[%s330 + $0x138] sm:$0xff] %v360
          %403 = vst [vmem:[%s330 + $0x140] sm:$0xff] %v356
          %404 = vst [vmem:[%s330 + $0x148] sm:$0xff] %v360
          %405 = vst [vmem:[%s330 + $0x150] sm:$0xff] %v356
          %406 = vst [vmem:[%s330 + $0x158] sm:$0xff] %v360
          %407 = vst [vmem:[%s330 + $0x160] sm:$0xff] %v356
          %408 = vst [vmem:[%s330 + $0x168] sm:$0xff] %v360
          %409 = vst [vmem:[%s330 + $0x170] sm:$0xff] %v356
          %410 = vst [vmem:[%s330 + $0x178] sm:$0xff] %v360
          %411 = vst [vmem:[%s330 + $0x180] sm:$0xff] %v356
          %412 = vst [vmem:[%s330 + $0x188] sm:$0xff] %v360
          %413 = vst [vmem:[%s330 + $0x190] sm:$0xff] %v356
          %414 = vst [vmem:[%s330 + $0x198] sm:$0xff] %v360
          %415 = vst [vmem:[%s330 + $0x1a0] sm:$0xff] %v356
          %416 = vst [vmem:[%s330 + $0x1a8] sm:$0xff] %v360
          %417 = vst [vmem:[%s330 + $0x1b0] sm:$0xff] %v356
          %418 = vst [vmem:[%s330 + $0x1b8] sm:$0xff] %v360
          %419 = vst [vmem:[%s330 + $0x1c0] sm:$0xff] %v356
          %420 = vst [vmem:[%s330 + $0x1c8] sm:$0xff] %v360
          %421 = vst [vmem:[%s330 + $0x1d0] sm:$0xff] %v356
          %422 = vst [vmem:[%s330 + $0x1d8] sm:$0xff] %v360
          %423 = vst [vmem:[%s330 + $0x1e0] sm:$0xff] %v356
          %424 = vst [vmem:[%s330 + $0x1e8] sm:$0xff] %v360
          %425 = vst [vmem:[%s330 + $0x1f0] sm:$0xff] %v356
          %426 = vst [vmem:[%s330 + $0x1f8] sm:$0xff] %v360
        $region48: #{tpu_custom_call.1} parent=31 // pred_fallthru
          _
        %s427 = sld [smem:[#allocation3 + %s37]]
        %p428 = scmp.lt.s32.totalorder %s38, %s427
        // Predicated region
        $region49: #{tpu_custom_call.1} parent=31 // pred_check
          %p429 = pneg %p428
        $region50: #{tpu_custom_call.1} parent=31 // pred_check_branch
          %431 = sbr.rel (%p429) target = $region52
        $region51: #{tpu_custom_call.1} parent=31 // pred_region
          %v432 = vld [vmem:[%s330] sm:$0xff]
          %v433 = vld [vmem:[%s330 + $0x8] sm:$0xff]
          %v434 = vld [vmem:[%s330 + $0x10] sm:$0xff]
          %v435 = vld [vmem:[%s330 + $0x18] sm:$0xff]
          %v436 = vld [vmem:[%s330 + $0x20] sm:$0xff]
          %v437 = vld [vmem:[%s330 + $0x28] sm:$0xff]
          %v438 = vld [vmem:[%s330 + $0x30] sm:$0xff]
          %v439 = vld [vmem:[%s330 + $0x38] sm:$0xff]
          %v440 = vld [vmem:[%s330 + $0x40] sm:$0xff]
          %v441 = vld [vmem:[%s330 + $0x48] sm:$0xff]
          %v442 = vld [vmem:[%s330 + $0x50] sm:$0xff]
          %v443 = vld [vmem:[%s330 + $0x58] sm:$0xff]
          %v444 = vld [vmem:[%s330 + $0x60] sm:$0xff]
          %v445 = vld [vmem:[%s330 + $0x68] sm:$0xff]
          %v446 = vld [vmem:[%s330 + $0x70] sm:$0xff]
          %v447 = vld [vmem:[%s330 + $0x78] sm:$0xff]
          %v448 = vld [vmem:[%s330 + $0x80] sm:$0xff]
          %v449 = vld [vmem:[%s330 + $0x88] sm:$0xff]
          %v450 = vld [vmem:[%s330 + $0x90] sm:$0xff]
          %v451 = vld [vmem:[%s330 + $0x98] sm:$0xff]
          %v452 = vld [vmem:[%s330 + $0xa0] sm:$0xff]
          %v453 = vld [vmem:[%s330 + $0xa8] sm:$0xff]
          %v454 = vld [vmem:[%s330 + $0xb0] sm:$0xff]
          %v455 = vld [vmem:[%s330 + $0xb8] sm:$0xff]
          %v456 = vld [vmem:[%s330 + $0xc0] sm:$0xff]
          %v457 = vld [vmem:[%s330 + $0xc8] sm:$0xff]
          %v458 = vld [vmem:[%s330 + $0xd0] sm:$0xff]
          %v459 = vld [vmem:[%s330 + $0xd8] sm:$0xff]
          %v460 = vld [vmem:[%s330 + $0xe0] sm:$0xff]
          %v461 = vld [vmem:[%s330 + $0xe8] sm:$0xff]
          %v462 = vld [vmem:[%s330 + $0xf0] sm:$0xff]
          %v463 = vld [vmem:[%s330 + $0xf8] sm:$0xff]
          %v464 = vld [vmem:[%s330 + $0x100] sm:$0xff]
          %v465 = vld [vmem:[%s330 + $0x108] sm:$0xff]
          %v466 = vld [vmem:[%s330 + $0x110] sm:$0xff]
          %v467 = vld [vmem:[%s330 + $0x118] sm:$0xff]
          %v468 = vld [vmem:[%s330 + $0x120] sm:$0xff]
          %v469 = vld [vmem:[%s330 + $0x128] sm:$0xff]
          %v470 = vld [vmem:[%s330 + $0x130] sm:$0xff]
          %v471 = vld [vmem:[%s330 + $0x138] sm:$0xff]
          %v472 = vld [vmem:[%s330 + $0x140] sm:$0xff]
          %v473 = vld [vmem:[%s330 + $0x148] sm:$0xff]
          %v474 = vld [vmem:[%s330 + $0x150] sm:$0xff]
          %v475 = vld [vmem:[%s330 + $0x158] sm:$0xff]
          %v476 = vld [vmem:[%s330 + $0x160] sm:$0xff]
          %v477 = vld [vmem:[%s330 + $0x168] sm:$0xff]
          %v478 = vld [vmem:[%s330 + $0x170] sm:$0xff]
          %v479 = vld [vmem:[%s330 + $0x178] sm:$0xff]
          %v480 = vld [vmem:[%s330 + $0x180] sm:$0xff]
          %v481 = vld [vmem:[%s330 + $0x188] sm:$0xff]
          %v482 = vld [vmem:[%s330 + $0x190] sm:$0xff]
          %v483 = vld [vmem:[%s330 + $0x198] sm:$0xff]
          %v484 = vld [vmem:[%s330 + $0x1a0] sm:$0xff]
          %v485 = vld [vmem:[%s330 + $0x1a8] sm:$0xff]
          %v486 = vld [vmem:[%s330 + $0x1b0] sm:$0xff]
          %v487 = vld [vmem:[%s330 + $0x1b8] sm:$0xff]
          %v488 = vld [vmem:[%s330 + $0x1c0] sm:$0xff]
          %v489 = vld [vmem:[%s330 + $0x1c8] sm:$0xff]
          %v490 = vld [vmem:[%s330 + $0x1d0] sm:$0xff]
          %v491 = vld [vmem:[%s330 + $0x1d8] sm:$0xff]
          %v492 = vld [vmem:[%s330 + $0x1e0] sm:$0xff]
          %v493 = vld [vmem:[%s330 + $0x1e8] sm:$0xff]
          %v494 = vld [vmem:[%s330 + $0x1f0] sm:$0xff]
          %v495 = vld [vmem:[%s330 + $0x1f8] sm:$0xff]
          %v496 = vld [vmem:[%s280] sm:$0xff]
          %v497 = vld [vmem:[%s280 + $0x8] sm:$0xff]
          %v498 = vld [vmem:[%s280 + $0x10] sm:$0xff]
          %v499 = vld [vmem:[%s280 + $0x18] sm:$0xff]
          %v500 = vld [vmem:[%s280 + $0x20] sm:$0xff]
          %v501 = vld [vmem:[%s280 + $0x28] sm:$0xff]
          %v502 = vld [vmem:[%s280 + $0x30] sm:$0xff]
          %v503 = vld [vmem:[%s280 + $0x38] sm:$0xff]
          %v504 = vld [vmem:[%s280 + $0x40] sm:$0xff]
          %v505 = vld [vmem:[%s280 + $0x48] sm:$0xff]
          %v506 = vld [vmem:[%s280 + $0x50] sm:$0xff]
          %v507 = vld [vmem:[%s280 + $0x58] sm:$0xff]
          %v508 = vld [vmem:[%s280 + $0x60] sm:$0xff]
          %v509 = vld [vmem:[%s280 + $0x68] sm:$0xff]
          %v510 = vld [vmem:[%s280 + $0x70] sm:$0xff]
          %v511 = vld [vmem:[%s280 + $0x78] sm:$0xff]
          %v512 = vld [vmem:[%s280 + $0x80] sm:$0xff]
          %v513 = vld [vmem:[%s280 + $0x88] sm:$0xff]
          %v514 = vld [vmem:[%s280 + $0x90] sm:$0xff]
          %v515 = vld [vmem:[%s280 + $0x98] sm:$0xff]
          %v516 = vld [vmem:[%s280 + $0xa0] sm:$0xff]
          %v517 = vld [vmem:[%s280 + $0xa8] sm:$0xff]
          %v518 = vld [vmem:[%s280 + $0xb0] sm:$0xff]
          %v519 = vld [vmem:[%s280 + $0xb8] sm:$0xff]
          %v520 = vld [vmem:[%s280 + $0xc0] sm:$0xff]
          %v521 = vld [vmem:[%s280 + $0xc8] sm:$0xff]
          %v522 = vld [vmem:[%s280 + $0xd0] sm:$0xff]
          %v523 = vld [vmem:[%s280 + $0xd8] sm:$0xff]
          %v524 = vld [vmem:[%s280 + $0xe0] sm:$0xff]
          %v525 = vld [vmem:[%s280 + $0xe8] sm:$0xff]
          %v526 = vld [vmem:[%s280 + $0xf0] sm:$0xff]
          %v527 = vld [vmem:[%s280 + $0xf8] sm:$0xff]
          %v528 = vld [vmem:[%s289] sm:$0xff]
          %v529 = vld [vmem:[%s289 + $0x8] sm:$0xff]
          %v530 = vld [vmem:[%s289 + $0x10] sm:$0xff]
          %v531 = vld [vmem:[%s289 + $0x18] sm:$0xff]
          %v532 = vld [vmem:[%s289 + $0x20] sm:$0xff]
          %v533 = vld [vmem:[%s289 + $0x28] sm:$0xff]
          %v534 = vld [vmem:[%s289 + $0x30] sm:$0xff]
          %v535 = vld [vmem:[%s289 + $0x38] sm:$0xff]
          %v536 = vld [vmem:[%s289 + $0x40] sm:$0xff]
          %v537 = vld [vmem:[%s289 + $0x48] sm:$0xff]
          %v538 = vld [vmem:[%s289 + $0x50] sm:$0xff]
          %v539 = vld [vmem:[%s289 + $0x58] sm:$0xff]
          %v540 = vld [vmem:[%s289 + $0x60] sm:$0xff]
          %v541 = vld [vmem:[%s289 + $0x68] sm:$0xff]
          %v542 = vld [vmem:[%s289 + $0x70] sm:$0xff]
          %v543 = vld [vmem:[%s289 + $0x78] sm:$0xff]
          %v544 = vld [vmem:[%s289 + $0x80] sm:$0xff]
          %v545 = vld [vmem:[%s289 + $0x88] sm:$0xff]
          %v546 = vld [vmem:[%s289 + $0x90] sm:$0xff]
          %v547 = vld [vmem:[%s289 + $0x98] sm:$0xff]
          %v548 = vld [vmem:[%s289 + $0xa0] sm:$0xff]
          %v549 = vld [vmem:[%s289 + $0xa8] sm:$0xff]
          %v550 = vld [vmem:[%s289 + $0xb0] sm:$0xff]
          %v551 = vld [vmem:[%s289 + $0xb8] sm:$0xff]
          %v552 = vld [vmem:[%s289 + $0xc0] sm:$0xff]
          %v553 = vld [vmem:[%s289 + $0xc8] sm:$0xff]
          %v554 = vld [vmem:[%s289 + $0xd0] sm:$0xff]
          %v555 = vld [vmem:[%s289 + $0xd8] sm:$0xff]
          %v556 = vld [vmem:[%s289 + $0xe0] sm:$0xff]
          %v557 = vld [vmem:[%s289 + $0xe8] sm:$0xff]
          %v558 = vld [vmem:[%s289 + $0xf0] sm:$0xff]
          %v559 = vld [vmem:[%s289 + $0xf8] sm:$0xff]
          %v592 = vunpack.c.l.b16 %v496
          %v593 = vunpack.c.h.b16 %v496
          %v594 = vunpack.c.l.b16 %v497
          %v595 = vunpack.c.h.b16 %v497
          %v596 = vunpack.c.l.b16 %v498
          %v597 = vunpack.c.h.b16 %v498
          %v598 = vunpack.c.l.b16 %v499
          %v599 = vunpack.c.h.b16 %v499
          %v600 = vunpack.c.l.b16 %v500
          %v601 = vunpack.c.h.b16 %v500
          %v602 = vunpack.c.l.b16 %v501
          %v603 = vunpack.c.h.b16 %v501
          %v604 = vunpack.c.l.b16 %v502
          %v605 = vunpack.c.h.b16 %v502
          %v606 = vunpack.c.l.b16 %v503
          %v607 = vunpack.c.h.b16 %v503
          %v608 = vunpack.c.l.b16 %v504
          %v609 = vunpack.c.h.b16 %v504
          %v610 = vunpack.c.l.b16 %v505
          %v611 = vunpack.c.h.b16 %v505
          %v612 = vunpack.c.l.b16 %v506
          %v613 = vunpack.c.h.b16 %v506
          %v614 = vunpack.c.l.b16 %v507
          %v615 = vunpack.c.h.b16 %v507
          %v616 = vunpack.c.l.b16 %v508
          %v617 = vunpack.c.h.b16 %v508
          %v618 = vunpack.c.l.b16 %v509
          %v619 = vunpack.c.h.b16 %v509
          %v620 = vunpack.c.l.b16 %v510
          %v621 = vunpack.c.h.b16 %v510
          %v622 = vunpack.c.l.b16 %v511
          %v623 = vunpack.c.h.b16 %v511
          %v624 = vunpack.c.l.b16 %v512
          %v625 = vunpack.c.h.b16 %v512
          %v626 = vunpack.c.l.b16 %v513
          %v627 = vunpack.c.h.b16 %v513
          %v628 = vunpack.c.l.b16 %v514
          %v629 = vunpack.c.h.b16 %v514
          %v630 = vunpack.c.l.b16 %v515
          %v631 = vunpack.c.h.b16 %v515
          %v632 = vunpack.c.l.b16 %v516
          %v633 = vunpack.c.h.b16 %v516
          %v634 = vunpack.c.l.b16 %v517
          %v635 = vunpack.c.h.b16 %v517
          %v636 = vunpack.c.l.b16 %v518
          %v637 = vunpack.c.h.b16 %v518
          %v638 = vunpack.c.l.b16 %v519
          %v639 = vunpack.c.h.b16 %v519
          %v640 = vunpack.c.l.b16 %v520
          %v641 = vunpack.c.h.b16 %v520
          %v642 = vunpack.c.l.b16 %v521
          %v643 = vunpack.c.h.b16 %v521
          %v644 = vunpack.c.l.b16 %v522
          %v645 = vunpack.c.h.b16 %v522
          %v646 = vunpack.c.l.b16 %v523
          %v647 = vunpack.c.h.b16 %v523
          %v648 = vunpack.c.l.b16 %v524
          %v649 = vunpack.c.h.b16 %v524
          %v650 = vunpack.c.l.b16 %v525
          %v651 = vunpack.c.h.b16 %v525
          %v652 = vunpack.c.l.b16 %v526
          %v653 = vunpack.c.h.b16 %v526
          %v654 = vunpack.c.l.b16 %v527
          %v655 = vunpack.c.h.b16 %v527
          %v656 = vpack.c.b16 %v594, %v592
          %v657 = vpack.c.b16 %v595, %v593
          %v658 = vpack.c.b16 %v598, %v596
          %v659 = vpack.c.b16 %v599, %v597
          %v660 = vpack.c.b16 %v602, %v600
          %v661 = vpack.c.b16 %v603, %v601
          %v662 = vpack.c.b16 %v606, %v604
          %v663 = vpack.c.b16 %v607, %v605
          %v664 = vpack.c.b16 %v610, %v608
          %v665 = vpack.c.b16 %v611, %v609
          %v666 = vpack.c.b16 %v614, %v612
          %v667 = vpack.c.b16 %v615, %v613
          %v668 = vpack.c.b16 %v618, %v616
          %v669 = vpack.c.b16 %v619, %v617
          %v670 = vpack.c.b16 %v622, %v620
          %v671 = vpack.c.b16 %v623, %v621
          %v672 = vpack.c.b16 %v626, %v624
          %v673 = vpack.c.b16 %v627, %v625
          %v674 = vpack.c.b16 %v630, %v628
          %v675 = vpack.c.b16 %v631, %v629
          %v676 = vpack.c.b16 %v634, %v632
          %v677 = vpack.c.b16 %v635, %v633
          %v678 = vpack.c.b16 %v638, %v636
          %v679 = vpack.c.b16 %v639, %v637
          %v680 = vpack.c.b16 %v642, %v640
          %v681 = vpack.c.b16 %v643, %v641
          %v682 = vpack.c.b16 %v646, %v644
          %v683 = vpack.c.b16 %v647, %v645
          %v684 = vpack.c.b16 %v650, %v648
          %v685 = vpack.c.b16 %v651, %v649
          %v686 = vpack.c.b16 %v654, %v652
          %v687 = vpack.c.b16 %v655, %v653
          %v752 = vunpack.c.l.b16 %v528
          %v753 = vunpack.c.h.b16 %v528
          %v754 = vunpack.c.l.b16 %v529
          %v755 = vunpack.c.h.b16 %v529
          %v756 = vunpack.c.l.b16 %v530
          %v757 = vunpack.c.h.b16 %v530
          %v758 = vunpack.c.l.b16 %v531
          %v759 = vunpack.c.h.b16 %v531
          %v760 = vunpack.c.l.b16 %v532
          %v761 = vunpack.c.h.b16 %v532
          %v762 = vunpack.c.l.b16 %v533
          %v763 = vunpack.c.h.b16 %v533
          %v764 = vunpack.c.l.b16 %v534
          %v765 = vunpack.c.h.b16 %v534
          %v766 = vunpack.c.l.b16 %v535
          %v767 = vunpack.c.h.b16 %v535
          %v768 = vunpack.c.l.b16 %v536
          %v769 = vunpack.c.h.b16 %v536
          %v770 = vunpack.c.l.b16 %v537
          %v771 = vunpack.c.h.b16 %v537
          %v772 = vunpack.c.l.b16 %v538
          %v773 = vunpack.c.h.b16 %v538
          %v774 = vunpack.c.l.b16 %v539
          %v775 = vunpack.c.h.b16 %v539
          %v776 = vunpack.c.l.b16 %v540
          %v777 = vunpack.c.h.b16 %v540
          %v778 = vunpack.c.l.b16 %v541
          %v779 = vunpack.c.h.b16 %v541
          %v780 = vunpack.c.l.b16 %v542
          %v781 = vunpack.c.h.b16 %v542
          %v782 = vunpack.c.l.b16 %v543
          %v783 = vunpack.c.h.b16 %v543
          %v784 = vunpack.c.l.b16 %v544
          %v785 = vunpack.c.h.b16 %v544
          %v786 = vunpack.c.l.b16 %v545
          %v787 = vunpack.c.h.b16 %v545
          %v788 = vunpack.c.l.b16 %v546
          %v789 = vunpack.c.h.b16 %v546
          %v790 = vunpack.c.l.b16 %v547
          %v791 = vunpack.c.h.b16 %v547
          %v792 = vunpack.c.l.b16 %v548
          %v793 = vunpack.c.h.b16 %v548
          %v794 = vunpack.c.l.b16 %v549
          %v795 = vunpack.c.h.b16 %v549
          %v796 = vunpack.c.l.b16 %v550
          %v797 = vunpack.c.h.b16 %v550
          %v798 = vunpack.c.l.b16 %v551
          %v799 = vunpack.c.h.b16 %v551
          %v800 = vunpack.c.l.b16 %v552
          %v801 = vunpack.c.h.b16 %v552
          %v802 = vunpack.c.l.b16 %v553
          %v803 = vunpack.c.h.b16 %v553
          %v804 = vunpack.c.l.b16 %v554
          %v805 = vunpack.c.h.b16 %v554
          %v806 = vunpack.c.l.b16 %v555
          %v807 = vunpack.c.h.b16 %v555
          %v808 = vunpack.c.l.b16 %v556
          %v809 = vunpack.c.h.b16 %v556
          %v810 = vunpack.c.l.b16 %v557
          %v811 = vunpack.c.h.b16 %v557
          %v812 = vunpack.c.l.b16 %v558
          %v813 = vunpack.c.h.b16 %v558
          %v814 = vunpack.c.l.b16 %v559
          %v815 = vunpack.c.h.b16 %v559
          %v816 = vpack.c.b16 %v754, %v752
          %v817 = vpack.c.b16 %v755, %v753
          %v818 = vpack.c.b16 %v758, %v756
          %v819 = vpack.c.b16 %v759, %v757
          %v820 = vpack.c.b16 %v762, %v760
          %v821 = vpack.c.b16 %v763, %v761
          %v822 = vpack.c.b16 %v766, %v764
          %v823 = vpack.c.b16 %v767, %v765
          %v824 = vpack.c.b16 %v770, %v768
          %v825 = vpack.c.b16 %v771, %v769
          %v826 = vpack.c.b16 %v774, %v772
          %v827 = vpack.c.b16 %v775, %v773
          %v828 = vpack.c.b16 %v778, %v776
          %v829 = vpack.c.b16 %v779, %v777
          %v830 = vpack.c.b16 %v782, %v780
          %v831 = vpack.c.b16 %v783, %v781
          %v832 = vpack.c.b16 %v786, %v784
          %v833 = vpack.c.b16 %v787, %v785
          %v834 = vpack.c.b16 %v790, %v788
          %v835 = vpack.c.b16 %v791, %v789
          %v836 = vpack.c.b16 %v794, %v792
          %v837 = vpack.c.b16 %v795, %v793
          %v838 = vpack.c.b16 %v798, %v796
          %v839 = vpack.c.b16 %v799, %v797
          %v840 = vpack.c.b16 %v802, %v800
          %v841 = vpack.c.b16 %v803, %v801
          %v842 = vpack.c.b16 %v806, %v804
          %v843 = vpack.c.b16 %v807, %v805
          %v844 = vpack.c.b16 %v810, %v808
          %v845 = vpack.c.b16 %v811, %v809
          %v846 = vpack.c.b16 %v814, %v812
          %v847 = vpack.c.b16 %v815, %v813
          %880 = vmatprep.subr.bf16.mxu0 %v817
          %881 = vmatpush1.bf16.msra.mxu0 %v816
          %882 = vmatprep.subr.bf16.mxu0 %v819
          %883 = vmatpush1.bf16.msra.mxu0 %v818
          %884 = vmatprep.subr.bf16.mxu0 %v821
          %885 = vmatpush1.bf16.msra.mxu0 %v820
          %886 = vmatprep.subr.bf16.mxu0 %v823
          %887 = vmatpush1.bf16.msra.mxu0 %v822
          %888 = vmatprep.subr.bf16.mxu0 %v825
          %889 = vmatpush1.bf16.msra.mxu0 %v824
          %890 = vmatprep.subr.bf16.mxu0 %v827
          %891 = vmatpush1.bf16.msra.mxu0 %v826
          %892 = vmatprep.subr.bf16.mxu0 %v829
          %893 = vmatpush1.bf16.msra.mxu0 %v828
          %894 = vmatprep.subr.bf16.mxu0 %v831
          %895 = vmatpush1.bf16.msra.mxu0 %v830
          %896 = vmatprep.subr.bf16.mxu0 %v833
          %897 = vmatpush1.bf16.msra.mxu0 %v832
          %898 = vmatprep.subr.bf16.mxu0 %v835
          %899 = vmatpush1.bf16.msra.mxu0 %v834
          %900 = vmatprep.subr.bf16.mxu0 %v837
          %901 = vmatpush1.bf16.msra.mxu0 %v836
          %902 = vmatprep.subr.bf16.mxu0 %v839
          %903 = vmatpush1.bf16.msra.mxu0 %v838
          %904 = vmatprep.subr.bf16.mxu0 %v841
          %905 = vmatpush1.bf16.msra.mxu0 %v840
          %906 = vmatprep.subr.bf16.mxu0 %v843
          %907 = vmatpush1.bf16.msra.mxu0 %v842
          %908 = vmatprep.subr.bf16.mxu0 %v845
          %909 = vmatpush1.bf16.msra.mxu0 %v844
          %910 = vmatprep.subr.bf16.mxu0 %v847
          %911 = vmatpush1.bf16.msra.mxu0 %v846
          %912 = vmatprep.mubr.bf16.mxu0 %v657
          %913 = vmatmul.mubr.bf16.gmra.mrb[0].mxu0 %v656
          %v914 = vpop.f32.mrb[0].mxu0
          %v915 = vadd.f32 0.0, %v914
          %v916 = vpop.f32.mrb[0].mxu0
          %v917 = vadd.f32 0.0, %v916
          %v918 = vpop.f32.mrb[0].mxu0
          %v919 = vadd.f32 0.0, %v918
          %v920 = vpop.f32.mrb[0].mxu0
          %v921 = vadd.f32 0.0, %v920
          %922 = vmatprep.mubr.bf16.mxu0 %v659
          %923 = vmatmul.mubr.bf16.gmra.mrb[0].mxu0 %v658
          %v924 = vpop.f32.mrb[0].mxu0
          %v925 = vadd.f32 0.0, %v924
          %v926 = vpop.f32.mrb[0].mxu0
          %v927 = vadd.f32 0.0, %v926
          %v928 = vpop.f32.mrb[0].mxu0
          %v929 = vadd.f32 0.0, %v928
          %v930 = vpop.f32.mrb[0].mxu0
          %v931 = vadd.f32 0.0, %v930
          %932 = vmatprep.mubr.bf16.mxu0 %v661
          %933 = vmatmul.mubr.bf16.gmra.mrb[0].mxu0 %v660
          %v934 = vpop.f32.mrb[0].mxu0
          %v935 = vadd.f32 0.0, %v934
          %v936 = vpop.f32.mrb[0].mxu0
          %v937 = vadd.f32 0.0, %v936
          %v938 = vpop.f32.mrb[0].mxu0
          %v939 = vadd.f32 0.0, %v938
          %v940 = vpop.f32.mrb[0].mxu0
          %v941 = vadd.f32 0.0, %v940
          %942 = vmatprep.mubr.bf16.mxu0 %v663
          %943 = vmatmul.mubr.bf16.gmra.mrb[0].mxu0 %v662
          %v944 = vpop.f32.mrb[0].mxu0
          %v945 = vadd.f32 0.0, %v944
          %v946 = vpop.f32.mrb[0].mxu0
          %v947 = vadd.f32 0.0, %v946
          %v948 = vpop.f32.mrb[0].mxu0
          %v949 = vadd.f32 0.0, %v948
          %v950 = vpop.f32.mrb[0].mxu0
          %v951 = vadd.f32 0.0, %v950
          %952 = vmatprep.mubr.bf16.mxu0 %v665
          %953 = vmatmul.mubr.bf16.gmra.mrb[0].mxu0 %v664
          %v954 = vpop.f32.mrb[0].mxu0
          %v955 = vadd.f32 0.0, %v954
          %v956 = vpop.f32.mrb[0].mxu0
          %v957 = vadd.f32 0.0, %v956
          %v958 = vpop.f32.mrb[0].mxu0
          %v959 = vadd.f32 0.0, %v958
          %v960 = vpop.f32.mrb[0].mxu0
          %v961 = vadd.f32 0.0, %v960
          %962 = vmatprep.mubr.bf16.mxu0 %v667
          %963 = vmatmul.mubr.bf16.gmra.mrb[0].mxu0 %v666
          %v964 = vpop.f32.mrb[0].mxu0
          %v965 = vadd.f32 0.0, %v964
          %v966 = vpop.f32.mrb[0].mxu0
          %v967 = vadd.f32 0.0, %v966
          %v968 = vpop.f32.mrb[0].mxu0
          %v969 = vadd.f32 0.0, %v968
          %v970 = vpop.f32.mrb[0].mxu0
          %v971 = vadd.f32 0.0, %v970
          %972 = vmatprep.mubr.bf16.mxu0 %v669
          %973 = vmatmul.mubr.bf16.gmra.mrb[0].mxu0 %v668
          %v974 = vpop.f32.mrb[0].mxu0
          %v975 = vadd.f32 0.0, %v974
          %v976 = vpop.f32.mrb[0].mxu0
          %v977 = vadd.f32 0.0, %v976
          %v978 = vpop.f32.mrb[0].mxu0
          %v979 = vadd.f32 0.0, %v978
          %v980 = vpop.f32.mrb[0].mxu0
          %v981 = vadd.f32 0.0, %v980
          %982 = vmatprep.mubr.bf16.mxu0 %v671
          %983 = vmatmul.mubr.bf16.gmra.mrb[0].mxu0 %v670
          %v984 = vpop.f32.mrb[0].mxu0
          %v985 = vadd.f32 0.0, %v984
          %v986 = vpop.f32.mrb[0].mxu0
          %v987 = vadd.f32 0.0, %v986
          %v988 = vpop.f32.mrb[0].mxu0
          %v989 = vadd.f32 0.0, %v988
          %v990 = vpop.f32.mrb[0].mxu0
          %v991 = vadd.f32 0.0, %v990
          %992 = vmatprep.mubr.bf16.mxu0 %v673
          %993 = vmatmul.mubr.bf16.gmra.mrb[0].mxu0 %v672
          %v994 = vpop.f32.mrb[0].mxu0
          %v995 = vadd.f32 0.0, %v994
          %v996 = vpop.f32.mrb[0].mxu0
          %v997 = vadd.f32 0.0, %v996
          %v998 = vpop.f32.mrb[0].mxu0
          %v999 = vadd.f32 0.0, %v998
          %v1000 = vpop.f32.mrb[0].mxu0
          %v1001 = vadd.f32 0.0, %v1000
          %1002 = vmatprep.mubr.bf16.mxu0 %v675
          %1003 = vmatmul.mubr.bf16.gmra.mrb[0].mxu0 %v674
          %v1004 = vpop.f32.mrb[0].mxu0
          %v1005 = vadd.f32 0.0, %v1004
          %v1006 = vpop.f32.mrb[0].mxu0
          %v1007 = vadd.f32 0.0, %v1006
          %v1008 = vpop.f32.mrb[0].mxu0
          %v1009 = vadd.f32 0.0, %v1008
          %v1010 = vpop.f32.mrb[0].mxu0
          %v1011 = vadd.f32 0.0, %v1010
          %1012 = vmatprep.mubr.bf16.mxu0 %v677
          %1013 = vmatmul.mubr.bf16.gmra.mrb[0].mxu0 %v676
          %v1014 = vpop.f32.mrb[0].mxu0
          %v1015 = vadd.f32 0.0, %v1014
          %v1016 = vpop.f32.mrb[0].mxu0
          %v1017 = vadd.f32 0.0, %v1016
          %v1018 = vpop.f32.mrb[0].mxu0
          %v1019 = vadd.f32 0.0, %v1018
          %v1020 = vpop.f32.mrb[0].mxu0
          %v1021 = vadd.f32 0.0, %v1020
          %1022 = vmatprep.mubr.bf16.mxu0 %v679
          %1023 = vmatmul.mubr.bf16.gmra.mrb[0].mxu0 %v678
          %v1024 = vpop.f32.mrb[0].mxu0
          %v1025 = vadd.f32 0.0, %v1024
          %v1026 = vpop.f32.mrb[0].mxu0
          %v1027 = vadd.f32 0.0, %v1026
          %v1028 = vpop.f32.mrb[0].mxu0
          %v1029 = vadd.f32 0.0, %v1028
          %v1030 = vpop.f32.mrb[0].mxu0
          %v1031 = vadd.f32 0.0, %v1030
          %1032 = vmatprep.mubr.bf16.mxu0 %v681
          %1033 = vmatmul.mubr.bf16.gmra.mrb[0].mxu0 %v680
          %v1034 = vpop.f32.mrb[0].mxu0
          %v1035 = vadd.f32 0.0, %v1034
          %v1036 = vpop.f32.mrb[0].mxu0
          %v1037 = vadd.f32 0.0, %v1036
          %v1038 = vpop.f32.mrb[0].mxu0
          %v1039 = vadd.f32 0.0, %v1038
          %v1040 = vpop.f32.mrb[0].mxu0
          %v1041 = vadd.f32 0.0, %v1040
          %1042 = vmatprep.mubr.bf16.mxu0 %v683
          %1043 = vmatmul.mubr.bf16.gmra.mrb[0].mxu0 %v682
          %v1044 = vpop.f32.mrb[0].mxu0
          %v1045 = vadd.f32 0.0, %v1044
          %v1046 = vpop.f32.mrb[0].mxu0
          %v1047 = vadd.f32 0.0, %v1046
          %v1048 = vpop.f32.mrb[0].mxu0
          %v1049 = vadd.f32 0.0, %v1048
          %v1050 = vpop.f32.mrb[0].mxu0
          %v1051 = vadd.f32 0.0, %v1050
          %1052 = vmatprep.mubr.bf16.mxu0 %v685
          %1053 = vmatmul.mubr.bf16.gmra.mrb[0].mxu0 %v684
          %v1054 = vpop.f32.mrb[0].mxu0
          %v1055 = vadd.f32 0.0, %v1054
          %v1056 = vpop.f32.mrb[0].mxu0
          %v1057 = vadd.f32 0.0, %v1056
          %v1058 = vpop.f32.mrb[0].mxu0
          %v1059 = vadd.f32 0.0, %v1058
          %v1060 = vpop.f32.mrb[0].mxu0
          %v1061 = vadd.f32 0.0, %v1060
          %1062 = vmatprep.mubr.bf16.mxu0 %v687
          %1063 = vmatmul.mubr.bf16.gmra.mrb[0].mxu0 %v686
          %v1064 = vpop.f32.mrb[0].mxu0
          %v1065 = vadd.f32 0.0, %v1064
          %v1066 = vpop.f32.mrb[0].mxu0
          %v1067 = vadd.f32 0.0, %v1066
          %v1068 = vpop.f32.mrb[0].mxu0
          %v1069 = vadd.f32 0.0, %v1068
          %v1070 = vpop.f32.mrb[0].mxu0
          %v1071 = vadd.f32 0.0, %v1070
          %1072 = vdwg.mxu0
          %v1073 = vadd.f32 %v432, %v915
          %v1074 = vadd.f32 %v433, %v917
          %v1075 = vadd.f32 %v434, %v919
          %v1076 = vadd.f32 %v435, %v921
          %v1077 = vadd.f32 %v436, %v925
          %v1078 = vadd.f32 %v437, %v927
          %v1079 = vadd.f32 %v438, %v929
          %v1080 = vadd.f32 %v439, %v931
          %v1081 = vadd.f32 %v440, %v935
          %v1082 = vadd.f32 %v441, %v937
          %v1083 = vadd.f32 %v442, %v939
          %v1084 = vadd.f32 %v443, %v941
          %v1085 = vadd.f32 %v444, %v945
          %v1086 = vadd.f32 %v445, %v947
          %v1087 = vadd.f32 %v446, %v949
          %v1088 = vadd.f32 %v447, %v951
          %v1089 = vadd.f32 %v448, %v955
          %v1090 = vadd.f32 %v449, %v957
          %v1091 = vadd.f32 %v450, %v959
          %v1092 = vadd.f32 %v451, %v961
          %v1093 = vadd.f32 %v452, %v965
          %v1094 = vadd.f32 %v453, %v967
          %v1095 = vadd.f32 %v454, %v969
          %v1096 = vadd.f32 %v455, %v971
          %v1097 = vadd.f32 %v456, %v975
          %v1098 = vadd.f32 %v457, %v977
          %v1099 = vadd.f32 %v458, %v979
          %v1100 = vadd.f32 %v459, %v981
          %v1101 = vadd.f32 %v460, %v985
          %v1102 = vadd.f32 %v461, %v987
          %v1103 = vadd.f32 %v462, %v989
          %v1104 = vadd.f32 %v463, %v991
          %v1105 = vadd.f32 %v464, %v995
          %v1106 = vadd.f32 %v465, %v997
          %v1107 = vadd.f32 %v466, %v999
          %v1108 = vadd.f32 %v467, %v1001
          %v1109 = vadd.f32 %v468, %v1005
          %v1110 = vadd.f32 %v469, %v1007
          %v1111 = vadd.f32 %v470, %v1009
          %v1112 = vadd.f32 %v471, %v1011
          %v1113 = vadd.f32 %v472, %v1015
          %v1114 = vadd.f32 %v473, %v1017
          %v1115 = vadd.f32 %v474, %v1019
          %v1116 = vadd.f32 %v475, %v1021
          %v1117 = vadd.f32 %v476, %v1025
          %v1118 = vadd.f32 %v477, %v1027
          %v1119 = vadd.f32 %v478, %v1029
          %v1120 = vadd.f32 %v479, %v1031
          %v1121 = vadd.f32 %v480, %v1035
          %v1122 = vadd.f32 %v481, %v1037
          %v1123 = vadd.f32 %v482, %v1039
          %v1124 = vadd.f32 %v483, %v1041
          %v1125 = vadd.f32 %v484, %v1045
          %v1126 = vadd.f32 %v485, %v1047
          %v1127 = vadd.f32 %v486, %v1049
          %v1128 = vadd.f32 %v487, %v1051
          %v1129 = vadd.f32 %v488, %v1055
          %v1130 = vadd.f32 %v489, %v1057
          %v1131 = vadd.f32 %v490, %v1059
          %v1132 = vadd.f32 %v491, %v1061
          %v1133 = vadd.f32 %v492, %v1065
          %v1134 = vadd.f32 %v493, %v1067
          %v1135 = vadd.f32 %v494, %v1069
          %v1136 = vadd.f32 %v495, %v1071
          %1137 = vst [vmem:[%s330] sm:$0xff] %v1073
          %1138 = vst [vmem:[%s330 + $0x8] sm:$0xff] %v1074
          %1139 = vst [vmem:[%s330 + $0x10] sm:$0xff] %v1075
          %1140 = vst [vmem:[%s330 + $0x18] sm:$0xff] %v1076
          %1141 = vst [vmem:[%s330 + $0x20] sm:$0xff] %v1077
          %1142 = vst [vmem:[%s330 + $0x28] sm:$0xff] %v1078
          %1143 = vst [vmem:[%s330 + $0x30] sm:$0xff] %v1079
          %1144 = vst [vmem:[%s330 + $0x38] sm:$0xff] %v1080
          %1145 = vst [vmem:[%s330 + $0x40] sm:$0xff] %v1081
          %1146 = vst [vmem:[%s330 + $0x48] sm:$0xff] %v1082
          %1147 = vst [vmem:[%s330 + $0x50] sm:$0xff] %v1083
          %1148 = vst [vmem:[%s330 + $0x58] sm:$0xff] %v1084
          %1149 = vst [vmem:[%s330 + $0x60] sm:$0xff] %v1085
          %1150 = vst [vmem:[%s330 + $0x68] sm:$0xff] %v1086
          %1151 = vst [vmem:[%s330 + $0x70] sm:$0xff] %v1087
          %1152 = vst [vmem:[%s330 + $0x78] sm:$0xff] %v1088
          %1153 = vst [vmem:[%s330 + $0x80] sm:$0xff] %v1089
          %1154 = vst [vmem:[%s330 + $0x88] sm:$0xff] %v1090
          %1155 = vst [vmem:[%s330 + $0x90] sm:$0xff] %v1091
          %1156 = vst [vmem:[%s330 + $0x98] sm:$0xff] %v1092
          %1157 = vst [vmem:[%s330 + $0xa0] sm:$0xff] %v1093
          %1158 = vst [vmem:[%s330 + $0xa8] sm:$0xff] %v1094
          %1159 = vst [vmem:[%s330 + $0xb0] sm:$0xff] %v1095
          %1160 = vst [vmem:[%s330 + $0xb8] sm:$0xff] %v1096
          %1161 = vst [vmem:[%s330 + $0xc0] sm:$0xff] %v1097
          %1162 = vst [vmem:[%s330 + $0xc8] sm:$0xff] %v1098
          %1163 = vst [vmem:[%s330 + $0xd0] sm:$0xff] %v1099
          %1164 = vst [vmem:[%s330 + $0xd8] sm:$0xff] %v1100
          %1165 = vst [vmem:[%s330 + $0xe0] sm:$0xff] %v1101
          %1166 = vst [vmem:[%s330 + $0xe8] sm:$0xff] %v1102
          %1167 = vst [vmem:[%s330 + $0xf0] sm:$0xff] %v1103
          %1168 = vst [vmem:[%s330 + $0xf8] sm:$0xff] %v1104
          %1169 = vst [vmem:[%s330 + $0x100] sm:$0xff] %v1105
          %1170 = vst [vmem:[%s330 + $0x108] sm:$0xff] %v1106
          %1171 = vst [vmem:[%s330 + $0x110] sm:$0xff] %v1107
          %1172 = vst [vmem:[%s330 + $0x118] sm:$0xff] %v1108
          %1173 = vst [vmem:[%s330 + $0x120] sm:$0xff] %v1109
          %1174 = vst [vmem:[%s330 + $0x128] sm:$0xff] %v1110
          %1175 = vst [vmem:[%s330 + $0x130] sm:$0xff] %v1111
          %1176 = vst [vmem:[%s330 + $0x138] sm:$0xff] %v1112
          %1177 = vst [vmem:[%s330 + $0x140] sm:$0xff] %v1113
          %1178 = vst [vmem:[%s330 + $0x148] sm:$0xff] %v1114
          %1179 = vst [vmem:[%s330 + $0x150] sm:$0xff] %v1115
          %1180 = vst [vmem:[%s330 + $0x158] sm:$0xff] %v1116
          %1181 = vst [vmem:[%s330 + $0x160] sm:$0xff] %v1117
          %1182 = vst [vmem:[%s330 + $0x168] sm:$0xff] %v1118
          %1183 = vst [vmem:[%s330 + $0x170] sm:$0xff] %v1119
          %1184 = vst [vmem:[%s330 + $0x178] sm:$0xff] %v1120
          %1185 = vst [vmem:[%s330 + $0x180] sm:$0xff] %v1121
          %1186 = vst [vmem:[%s330 + $0x188] sm:$0xff] %v1122
          %1187 = vst [vmem:[%s330 + $0x190] sm:$0xff] %v1123
          %1188 = vst [vmem:[%s330 + $0x198] sm:$0xff] %v1124
          %1189 = vst [vmem:[%s330 + $0x1a0] sm:$0xff] %v1125
          %1190 = vst [vmem:[%s330 + $0x1a8] sm:$0xff] %v1126
          %1191 = vst [vmem:[%s330 + $0x1b0] sm:$0xff] %v1127
          %1192 = vst [vmem:[%s330 + $0x1b8] sm:$0xff] %v1128
          %1193 = vst [vmem:[%s330 + $0x1c0] sm:$0xff] %v1129
          %1194 = vst [vmem:[%s330 + $0x1c8] sm:$0xff] %v1130
          %1195 = vst [vmem:[%s330 + $0x1d0] sm:$0xff] %v1131
          %1196 = vst [vmem:[%s330 + $0x1d8] sm:$0xff] %v1132
          %1197 = vst [vmem:[%s330 + $0x1e0] sm:$0xff] %v1133
          %1198 = vst [vmem:[%s330 + $0x1e8] sm:$0xff] %v1134
          %1199 = vst [vmem:[%s330 + $0x1f0] sm:$0xff] %v1135
          %1200 = vst [vmem:[%s330 + $0x1f8] sm:$0xff] %v1136
        $region52: #{tpu_custom_call.1} parent=31 // pred_fallthru
          _
        %s1201 = sand.u32 %s162, 1
        %s1202 = scalar_lea.sflag [#allocation7], %s1201
        %s1203 = sand.u32 %s162, 1
        %s1204 = smul.addr %s1203, 512
        %s1205 = scalar_lea.vmem [#allocation11], %s1204
        // Predicated region
        $region53: #{tpu_custom_call.1} parent=31 // pred_check
          %p1206 = pneg %p172
        $region54: #{tpu_custom_call.1} parent=31 // pred_check_branch
          %1208 = sbr.rel (%p1206) target = $region56
        $region55: #{tpu_custom_call.1} parent=31 // pred_region
          %s1209 = smul.u32 32, %s36
          %s1210 = smul.u32 2, %s37
          %s1212 = ssub.s32 8192, 8192
          %1213 = vsyncadd %s1202, %s1212
          %s1214 = smul.addr %s1209, 6
          %s1215 = sadd.s32 %s1210, %s1214
          %s1216 = smul.addr %s1215, 128
          %s1217 = scalar_lea.hbm %s5, %s1216
          %s1218 = sshll.u32 %s1205, 4
          %s1219 = int_to_ptr.vmem [resolvable:$true] %s1218
          %1224 = dma.vmem_to_hbm [thread:$0]  %s1219, 8192, %s1217, %s1202, 256, 768, 16
        $region56: #{tpu_custom_call.1} parent=31 // pred_fallthru
          _
      $region32: #{tpu_custom_call.1} parent=5 // pred_fallthru
        _
      %p1225 = scmp.le.s32.totalorder 2, %s26
      // Predicated region
      $region57: #{tpu_custom_call.1} parent=5 // pred_check
        %p1226 = pneg %p1225
      $region58: #{tpu_custom_call.1} parent=5 // pred_check_branch
        %1228 = sbr.rel (%p1226) target = $region60
      $region59: #{tpu_custom_call.1} parent=5 // pred_region
        %s1229 = ssub.s32 %s26, 2
        // Predicated region
        $region61: #{tpu_custom_call.1} parent=59 // pred_check
          %p1230 = pneg %p178
        $region62: #{tpu_custom_call.1} parent=59 // pred_check_branch
          %1232 = sbr.rel (%p1230) target = $region64
        $region63: #{tpu_custom_call.1} parent=59 // pred_region
          %s1233 = sand.u32 %s163, 1
          %s1234 = scalar_lea.sflag [#allocation7], %s1233
          %s1235 = sand.u32 %s163, 1
          %s1236 = smul.addr %s1235, 512
          %s1237 = scalar_lea.vmem [#allocation11], %s1236
          %1238 = dma.done %s1234, 8192
        $region64: #{tpu_custom_call.1} parent=59 // pred_fallthru
          _
      $region60: #{tpu_custom_call.1} parent=5 // pred_fallthru
        _
    $region6: #{tpu_custom_call.1} parent=1 // loop_footer
      %s30 = sadd.s32 1, %s26
    $region7: #{tpu_custom_call.1} parent=1 // loop_footer_branch
      %25 = sbr.rel target = $region3
    $region8: #{tpu_custom_call.1} parent=1 // loop_exit
      _
    %1239 = vsyncpa [#allocation6], 1
    %s1240 = scalar_lea.sflag [#allocation6], 1
    %1241 = vsyncpa %s1240, 1
    %1242 = vsyncpa [#allocation9], 1
    %s1243 = scalar_lea.sflag [#allocation9], 1
    %1244 = vsyncpa %s1243, 1
    %1245 = vsyncpa [#allocation7], 1
    %s1246 = scalar_lea.sflag [#allocation7], 1
    %1247 = vsyncpa %s1246, 1

</llo_original>
